<compile_context>
chip_gen: v7x
topology: tpu7x:2x2x1
jax: 0.10.0
libtpu: 0.0.40
codegen_flags: <defaults>
</compile_context>

<pallas_src>
import jax
import jax.numpy as jnp
import numpy as np
from jax.experimental import pallas as pl
from jax.experimental.pallas import tpu as pltpu

EPS = 1e-5  # PyTorch BatchNorm default eps


# --------------------------------------------------------------------------- #
# One-time weight packing: BN folds, tap flips, im2col layout, single blob     #
# --------------------------------------------------------------------------- #
def _bn_affine_np(bn):
    """Eval-mode BatchNorm1d as per-channel scale/shift (float64)."""
    g = np.asarray(bn['g'], np.float64)
    b = np.asarray(bn['b'], np.float64)
    m = np.asarray(bn['m'], np.float64)
    v = np.asarray(bn['v'], np.float64)
    s = g / np.sqrt(v + EPS)
    return s, b - m * s


def pack_params(p, *, length=34):
    """Pure layout/fold work executed ONCE at load time; returns (blob, meta).

    blob: single f32 array holding every folded weight/bias segment (8-row-aligned offsets).
    meta: static layout + sizes consumed at kernel trace time (python ints only).
    """
    f64 = lambda a: np.asarray(a, np.float64)
    s0, sh0 = _bn_affine_np(p['bn0'])
    s1, sh1 = _bn_affine_np(p['bn1'])
    s2, sh2 = _bn_affine_np(p['bn2'])
    w1, b1 = f64(p['w1']), f64(p['b1'])
    w2, b2 = f64(p['w2']), f64(p['b2'])
    hidden = w1.shape[1]
    c0 = w2.shape[1] // length             # decoder_size
    dim = p['w4'].shape[0]
    S = length + 6                         # lane segment: 4 left-margin + L + 2 right-margin
    PAD = 4

    # pre_net Linear1 with BN0 folded; LeakyReLU(True) == slope 1.0 == identity -> dropped.
    w1f = w1 * s0[None, :]
    b1f = (b1 * s0 + sh0)[None, :]
    # pre_net Linear2 with output columns pre-scattered into zero-margined segments:
    # X[b, c*S + PAD + l] == (h @ w2 + b2)[b, c*length + l]; margin columns are exactly 0.
    w2p = np.zeros((hidden, c0, S))
    w2p[:, :, PAD:PAD + length] = w2.reshape(hidden, c0, length)
    b2p = np.zeros((c0, S))
    b2p[:, PAD:PAD + length] = b2.reshape(c0, length)
    w2p = w2p.reshape(hidden, c0 * S)
    b2p = b2p.reshape(1, c0 * S)

    def pack_convT(wt, bt, s, sh):         # PyTorch ConvTranspose1d weight (Cin, Cout, K)
        wt, bt = f64(wt), f64(bt)
        cin, cout, k = wt.shape
        w = np.transpose(wt[:, :, ::-1], (2, 0, 1)).reshape(k * cin, cout).T  # (Cout, K*Cin)
        return w * s[:, None], (bt * s + sh)[:, None]                          # BN folded

    def pack_conv(w, b):                   # PyTorch Conv1d weight (Cout, Cin, K)
        w, b = f64(w), f64(b)
        cout, cin, k = w.shape
        return np.transpose(w, (2, 1, 0)).reshape(k * cin, cout).T, b[:, None]

    wc1, bc1 = pack_convT(p['wt1'], p['bt1'], s1, sh1)
    wc2, bc2 = pack_convT(p['wt2'], p['bt2'], s2, sh2)
    wc3, bc3 = pack_conv(p['w3'], p['b3'])
    wc4, bc4 = pack_conv(p['w4'], p['b4'])

    segs = [('w1f', w1f), ('b1f', b1f), ('w2p', w2p), ('b2p', b2p),
            ('wc1', wc1), ('bc1', bc1), ('wc2', wc2), ('bc2', bc2),
            ('wc3', wc3), ('bc3', bc3), ('wc4', wc4), ('bc4', bc4)]
    ncols = max(a.shape[1] for _, a in segs)
    ncols = -(-ncols // 128) * 128         # lane-tile aligned blob width
    layout, row = {}, 0
    for name, a in segs:
        layout[name] = (row, (int(a.shape[0]), int(a.shape[1])))
        row = -(-(row + a.shape[0]) // 8) * 8   # next segment at an 8-row boundary
    blob = np.zeros((row, ncols), np.float32)
    for name, a in segs:
        r0, _ = layout[name]
        blob[r0:r0 + a.shape[0], :a.shape[1]] = a

    meta = dict(layout=layout, length=length, S=S, c0=c0, dim=dim)
    return jnp.asarray(blob), meta


# --------------------------------------------------------------------------- #
# Fused kernel: pre_net + 4-layer conv stack, whole batch on the lane axis     #
# --------------------------------------------------------------------------- #
def _make_kernel(meta):
    L, S, C0 = meta['length'], meta['S'], meta['c0']
    layout = meta['layout']

    def sl(ref, name):                     # static slice of the packed blob (free at runtime)
        r0, (h, w) = layout[name]
        return ref[r0:r0 + h, 0:w]

    def kernel(feat_ref, blob_ref, out_ref):
        B = out_ref.shape[0]
        BS = B * S

        # ---- pre_net: Linear -> BN0(folded) -> LeakyReLU(True)==identity -> Linear ----
        x = feat_ref[...].astype(jnp.float32)
        h = jnp.dot(x, sl(blob_ref, 'w1f'),
                    preferred_element_type=jnp.float32) + sl(blob_ref, 'b1f')    # (B, hidden)
        X = jnp.dot(h, sl(blob_ref, 'w2p'),
                    preferred_element_type=jnp.float32) + sl(blob_ref, 'b2p')    # (B, C0*S)

        # Hand off to the conv stack channels-first with the batch on the LANE axis:
        # x0[c, b*S + s] = X[b, c*S + s].  Every moved piece is a 1-sublane x S-lane slab,
        # so this is pure copies (no lane<->sublane transposes, no per-channel matmuls).
        x0 = jnp.concatenate(
            [jnp.concatenate([X[b:b + 1, c * S:(c + 1) * S] for b in range(B)], axis=1)
             for c in range(C0)], axis=0)                                        # (C0, B*S)

        def shift_left(v, k):              # result[:, j] = v[:, j+k], zero-filled at the end
            return jnp.concatenate(
                [v[:, k:], jnp.zeros((v.shape[0], k), jnp.float32)], axis=1)

        def conv3(v, wname, bname, lrelu):
            # size-3 conv as ONE whole-batch im2col matmul: (Cout, 3*Cin) @ (3*Cin, B*S)
            cols = jnp.concatenate([v, shift_left(v, 1), shift_left(v, 2)], axis=0)
            y = jnp.dot(sl(blob_ref, wname), cols,
                        preferred_element_type=jnp.float32) + sl(blob_ref, bname)
            return jnp.where(y >= 0, y, 0.2 * y) if lrelu else y                 # LeakyReLU(0.2)

        # ConvTranspose1d #1 (taps pre-flipped, BN1 folded). Data: seg [4,4+L) -> [2,2+L+2).
        y = conv3(x0, 'wc1', 'bc1', True)
        # Re-zero the segment margins so ConvTranspose1d #2 sees exact zero padding
        # (the margin lanes picked up bias/BN garbage above).
        lane = jax.lax.broadcasted_iota(jnp.int32, (1, BS), 1)
        keep = None
        for b in range(B):
            mb = (lane >= b * S + 2) & (lane < b * S + 2 + (L + 2))
            keep = mb if keep is None else jnp.logical_or(keep, mb)
        y = jnp.where(keep, y, 0.0)
        # ConvTranspose1d #2 (BN2 folded). Data: seg [2,2+L+2) -> [0, L+4).
        y = conv3(y, 'wc2', 'bc2', True)
        # Conv1d 'valid' x2. Data: [0,L+4) -> [0,L+2) -> [0,L).
        y = conv3(y, 'wc3', 'bc3', False)
        y = conv3(y, 'wc4', 'bc4', False)                                        # (dim, B*S)

        # ONE whole-batch transpose, then plain sublane-sliced stores (== out.transpose(1,2)).
        yt = y.T                                                                 # (B*S, dim)
        for b in range(B):
            out_ref[b] = yt[b * S:b * S + L, :]

    return kernel


def make_forward(meta):
    """Jitted forward: a single pallas_call, 2 input DMAs (feat + packed blob), no grid."""
    kernel = _make_kernel(meta)
    L, dim = meta['length'], meta['dim']
    vmem = pl.BlockSpec(memory_space=pltpu.MemorySpace.VMEM)

    @jax.jit
    def fwd(feat, blob):
        B = feat.shape[0]
        return pl.pallas_call(
            kernel,
            out_shape=jax.ShapeDtypeStruct((B, L, dim), jnp.float32),
            in_specs=[vmem, vmem],
            out_specs=vmem,
            # Single invocation, no grid: total footprint < 0.5 MiB, far under VMEM on any
            # generation; no pipelining / vmem_limit tuning / megacore split is worthwhile.
            # (If batch grows to >= ~16, add a batch grid axis with
            #  dimension_semantics=("parallel",) so v7x's two TensorCores both get work.)
        )(feat, blob)

    return fwd


# --------------------------------------------------------------------------- #
# Deterministic synthetic parameters (shapes follow the module __init__)       #
# --------------------------------------------------------------------------- #
def init_params(key, *, length=34, dim=16, feat_size=32):
    assert length == 34
    decoder_size = feat_size // 8          # 4
    hidden = feat_size * 2                 # 64
    pre_out = decoder_size * length        # 136

    keys = iter(jax.random.split(key, 32))

    def nrm(shape, scale=0.1):
        return scale * jax.random.normal(next(keys), shape, jnp.float32)

    def bn(c):
        return dict(g=1.0 + nrm((c,)), b=nrm((c,)), m=nrm((c,)),
                    v=jax.random.uniform(next(keys), (c,), jnp.float32, 0.5, 1.5))

    return {
        # pre_net
        'w1': nrm((feat_size, hidden)), 'b1': nrm((hidden,)),
        'bn0': bn(hidden),
        'w2': nrm((hidden, pre_out)), 'b2': nrm((pre_out,)),
        # net (PyTorch native weight layouts)
        'wt1': nrm((decoder_size, feat_size, 3)), 'bt1': nrm((feat_size,)),     # ConvTranspose1d
        'bn1': bn(feat_size),
        'wt2': nrm((feat_size, feat_size, 3)), 'bt2': nrm((feat_size,)),        # ConvTranspose1d
        'bn2': bn(feat_size),
        'w3': nrm((feat_size * 2, feat_size, 3)), 'b3': nrm((feat_size * 2,)),  # Conv1d
        'w4': nrm((dim, feat_size * 2, 3)), 'b4': nrm((dim,)),                  # Conv1d
    }


# --------------------------------------------------------------------------- #
# Float64 NumPy ground truth (precision-unambiguous reference)                 #
# --------------------------------------------------------------------------- #
def _ref_forward_np(params, feat, *, length=34):
    p = jax.tree_util.tree_map(lambda a: np.asarray(a, np.float64), params)
    x = np.asarray(feat, np.float64)

    def bn_fold(bn):
        s = bn['g'] / np.sqrt(bn['v'] + EPS)
        return s, bn['b'] - bn['m'] * s

    s0, sh0 = bn_fold(p['bn0'])
    h = x @ p['w1'] + p['b1']
    h = h * s0 + sh0
    h = np.where(h >= 0, h, 1.0 * h)          # nn.LeakyReLU(True): slope True == 1.0
    h = h @ p['w2'] + p['b2']
    xc = h.reshape(x.shape[0], -1, length)    # (B, decoder_size, L)  -- PyTorch .view, NCW

    def convT(x, w, b):                       # ConvTranspose1d, w: (Cin, Cout, K), stride 1
        cin, cout, kk = w.shape
        bsz, _, l = x.shape
        y = np.zeros((bsz, cout, l + kk - 1))
        for n in range(l + kk - 1):
            for k in range(kk):
                m = n - k
                if 0 <= m < l:
                    y[:, :, n] += x[:, :, m] @ w[:, :, k]
        return y + b[None, :, None]

    def conv(x, w, b):                        # Conv1d, w: (Cout, Cin, K), valid
        kk = w.shape[2]
        lout = x.shape[2] - kk + 1
        y = np.zeros((x.shape[0], w.shape[0], lout))
        for k in range(kk):
            y += np.einsum('bil,oi->bol', x[:, :, k:k + lout], w[:, :, k])
        return y + b[None, :, None]

    def bn_lrelu(x, bn):
        s, sh = bn_fold(bn)
        x = x * s[None, :, None] + sh[None, :, None]
        return np.where(x >= 0, x, 0.2 * x)

    xc = bn_lrelu(convT(xc, p['wt1'], p['bt1']), p['bn1'])
    xc = bn_lrelu(convT(xc, p['wt2'], p['bt2']), p['bn2'])
    xc = conv(xc, p['w3'], p['b3'])
    xc = conv(xc, p['w4'], p['b4'])
    return np.transpose(xc, (0, 2, 1))        # (B, L, dim)


if __name__ == "__main__":
    B, length, dim, feat_size = 2, 34, 16, 32
    key = jax.random.PRNGKey(0)
    kp, kf = jax.random.split(key)
    params = init_params(kp, length=length, dim=dim, feat_size=feat_size)
    feat = jax.random.normal(kf, (B, feat_size), jnp.float32)

    blob, meta = pack_params(params, length=length)        # one-time weight packing/folding
    fwd = make_forward(meta)
    out = jax.block_until_ready(fwd(feat, blob))
    assert out.shape == (B, length, dim), out.shape

    ref = _ref_forward_np(params, feat, length=length)     # float64 ground truth
    out_np = np.asarray(out, np.float64)
    assert np.isfinite(out_np).all()
    rel_err = float(np.max(np.abs(out_np - ref)) / (np.max(np.abs(ref)) + 1e-12))
    # Tight check: only f32 rounding separates the kernel from the float64 reference;
    # layout/tap/fold/margin bugs would be O(1).
    assert rel_err < 1e-4, rel_err
    print("KERNEL_OK")
</pallas_src>

<mosaic_0001>
module attributes {stable_mosaic.version = 11 : i64} {
  func.func @kernel(%arg0: memref<2x32xf32, #tpu.memory_space<vmem>>, %arg1: memref<400x256xf32, #tpu.memory_space<vmem>>, %arg2: memref<2x34x16xf32, #tpu.memory_space<vmem>>) attributes {dimension_semantics = [], scalar_prefetch = 0 : i64, scratch_operands = 0 : i64, tpu.core_type = #tpu.core_type<tc>} {
    %c0 = arith.constant 0 : index
    %c0_0 = arith.constant 0 : index
    %0 = vector.load %arg0[%c0, %c0_0] : memref<2x32xf32, #tpu.memory_space<vmem>>, vector<2x32xf32>
    %c0_1 = arith.constant 0 : index
    %c0_2 = arith.constant 0 : index
    %1 = vector.load %arg1[%c0_1, %c0_2] : memref<400x256xf32, #tpu.memory_space<vmem>>, vector<32x64xf32>
    %cst = arith.constant dense<0.000000e+00> : vector<2x64xf32>
    %2 = tpu.matmul %0, %1, %cst {dimension_numbers = #tpu.dot_dimension_numbers<[1], [0], [0], [1], [0, 0, 1, 1], [], []>} : vector<2x32xf32>, vector<32x64xf32>, vector<2x64xf32> -> vector<2x64xf32>
    %c32 = arith.constant 32 : index
    %c0_3 = arith.constant 0 : index
    %3 = vector.load %arg1[%c32, %c0_3] : memref<400x256xf32, #tpu.memory_space<vmem>>, vector<1x64xf32>
    %4 = vector.broadcast %3 : vector<1x64xf32> to vector<2x64xf32>
    %5 = arith.addf %2, %4 : vector<2x64xf32>
    %c40 = arith.constant 40 : index
    %c0_4 = arith.constant 0 : index
    %6 = vector.load %arg1[%c40, %c0_4] : memref<400x256xf32, #tpu.memory_space<vmem>>, vector<64x160xf32>
    %cst_5 = arith.constant dense<0.000000e+00> : vector<2x160xf32>
    %7 = tpu.matmul %5, %6, %cst_5 {dimension_numbers = #tpu.dot_dimension_numbers<[1], [0], [0], [1], [0, 0, 1, 1], [], []>} : vector<2x64xf32>, vector<64x160xf32>, vector<2x160xf32> -> vector<2x160xf32>
    %c104 = arith.constant 104 : index
    %c0_6 = arith.constant 0 : index
    %8 = vector.load %arg1[%c104, %c0_6] : memref<400x256xf32, #tpu.memory_space<vmem>>, vector<1x160xf32>
    %9 = vector.broadcast %8 : vector<1x160xf32> to vector<2x160xf32>
    %10 = arith.addf %7, %9 : vector<2x160xf32>
    %11 = vector.extract_strided_slice %10 {offsets = [0, 0], sizes = [1, 40], strides = [1, 1]} : vector<2x160xf32> to vector<1x40xf32>
    %12 = vector.extract_strided_slice %10 {offsets = [1, 0], sizes = [1, 40], strides = [1, 1]} : vector<2x160xf32> to vector<1x40xf32>
    %13 = tpu.concatenate %11, %12 in 1 : vector<1x40xf32>, vector<1x40xf32> -> vector<1x80xf32>
    %14 = vector.extract_strided_slice %10 {offsets = [0, 40], sizes = [1, 40], strides = [1, 1]} : vector<2x160xf32> to vector<1x40xf32>
    %15 = vector.extract_strided_slice %10 {offsets = [1, 40], sizes = [1, 40], strides = [1, 1]} : vector<2x160xf32> to vector<1x40xf32>
    %16 = tpu.concatenate %14, %15 in 1 : vector<1x40xf32>, vector<1x40xf32> -> vector<1x80xf32>
    %17 = vector.extract_strided_slice %10 {offsets = [0, 80], sizes = [1, 40], strides = [1, 1]} : vector<2x160xf32> to vector<1x40xf32>
    %18 = vector.extract_strided_slice %10 {offsets = [1, 80], sizes = [1, 40], strides = [1, 1]} : vector<2x160xf32> to vector<1x40xf32>
    %19 = tpu.concatenate %17, %18 in 1 : vector<1x40xf32>, vector<1x40xf32> -> vector<1x80xf32>
    %20 = vector.extract_strided_slice %10 {offsets = [0, 120], sizes = [1, 40], strides = [1, 1]} : vector<2x160xf32> to vector<1x40xf32>
    %21 = vector.extract_strided_slice %10 {offsets = [1, 120], sizes = [1, 40], strides = [1, 1]} : vector<2x160xf32> to vector<1x40xf32>
    %22 = tpu.concatenate %20, %21 in 1 : vector<1x40xf32>, vector<1x40xf32> -> vector<1x80xf32>
    %23 = tpu.concatenate %13, %16, %19, %22 in 0 : vector<1x80xf32>, vector<1x80xf32>, vector<1x80xf32>, vector<1x80xf32> -> vector<4x80xf32>
    %24 = vector.extract_strided_slice %23 {offsets = [0, 1], sizes = [4, 79], strides = [1, 1]} : vector<4x80xf32> to vector<4x79xf32>
    %cst_7 = arith.constant 0.000000e+00 : f32
    %25 = vector.broadcast %cst_7 : f32 to vector<4x1xf32>
    %26 = tpu.concatenate %24, %25 in 1 : vector<4x79xf32>, vector<4x1xf32> -> vector<4x80xf32>
    %27 = vector.extract_strided_slice %23 {offsets = [0, 2], sizes = [4, 78], strides = [1, 1]} : vector<4x80xf32> to vector<4x78xf32>
    %cst_8 = arith.constant 0.000000e+00 : f32
    %28 = vector.broadcast %cst_8 : f32 to vector<4x2xf32>
    %29 = tpu.concatenate %27, %28 in 1 : vector<4x78xf32>, vector<4x2xf32> -> vector<4x80xf32>
    %30 = tpu.concatenate %23, %26, %29 in 0 : vector<4x80xf32>, vector<4x80xf32>, vector<4x80xf32> -> vector<12x80xf32>
    %c112 = arith.constant 112 : index
    %c0_9 = arith.constant 0 : index
    %31 = vector.load %arg1[%c112, %c0_9] : memref<400x256xf32, #tpu.memory_space<vmem>>, vector<32x12xf32>
    %cst_10 = arith.constant dense<0.000000e+00> : vector<32x80xf32>
    %32 = tpu.matmul %31, %30, %cst_10 {dimension_numbers = #tpu.dot_dimension_numbers<[1], [0], [0], [1], [0, 0, 1, 1], [], []>} : vector<32x12xf32>, vector<12x80xf32>, vector<32x80xf32> -> vector<32x80xf32>
    %c144 = arith.constant 144 : index
    %c0_11 = arith.constant 0 : index
    %33 = vector.load %arg1[%c144, %c0_11] : memref<400x256xf32, #tpu.memory_space<vmem>>, vector<32x1xf32>
    %34 = vector.broadcast %33 : vector<32x1xf32> to vector<32x80xf32>
    %35 = arith.addf %32, %34 : vector<32x80xf32>
    %cst_12 = arith.constant 0.000000e+00 : f32
    %36 = vector.broadcast %cst_12 : f32 to vector<32x80xf32>
    %37 = arith.cmpf oge, %35, %36 : vector<32x80xf32>
    %cst_13 = arith.constant 2.000000e-01 : f32
    %38 = vector.broadcast %cst_13 : f32 to vector<32x80xf32>
    %39 = arith.mulf %38, %35 : vector<32x80xf32>
    %40 = arith.select %37, %35, %39 : vector<32x80xi1>, vector<32x80xf32>
    %41 = tpu.iota {dimensions = array<i32: 1>} : vector<1x80xi32>
    %c2_i32 = arith.constant 2 : i32
    %42 = vector.broadcast %c2_i32 : i32 to vector<1x80xi32>
    %43 = arith.cmpi sge, %41, %42 : vector<1x80xi32>
    %c38_i32 = arith.constant 38 : i32
    %44 = vector.broadcast %c38_i32 : i32 to vector<1x80xi32>
    %45 = arith.cmpi slt, %41, %44 : vector<1x80xi32>
    %46 = arith.andi %43, %45 : vector<1x80xi1>
    %c42_i32 = arith.constant 42 : i32
    %47 = vector.broadcast %c42_i32 : i32 to vector<1x80xi32>
    %48 = arith.cmpi sge, %41, %47 : vector<1x80xi32>
    %c78_i32 = arith.constant 78 : i32
    %49 = vector.broadcast %c78_i32 : i32 to vector<1x80xi32>
    %50 = arith.cmpi slt, %41, %49 : vector<1x80xi32>
    %51 = arith.andi %48, %50 : vector<1x80xi1>
    %52 = arith.ori %46, %51 : vector<1x80xi1>
    %cst_14 = arith.constant 0.000000e+00 : f32
    %53 = vector.shape_cast %52 : vector<1x80xi1> to vector<1x80xi1>
    %54 = vector.broadcast %53 : vector<1x80xi1> to vector<32x80xi1>
    %55 = vector.broadcast %cst_14 : f32 to vector<32x80xf32>
    %56 = arith.select %54, %40, %55 : vector<32x80xi1>, vector<32x80xf32>
    %57 = vector.extract_strided_slice %56 {offsets = [0, 1], sizes = [32, 79], strides = [1, 1]} : vector<32x80xf32> to vector<32x79xf32>
    %cst_15 = arith.constant 0.000000e+00 : f32
    %58 = vector.broadcast %cst_15 : f32 to vector<32x1xf32>
    %59 = tpu.concatenate %57, %58 in 1 : vector<32x79xf32>, vector<32x1xf32> -> vector<32x80xf32>
    %60 = vector.extract_strided_slice %56 {offsets = [0, 2], sizes = [32, 78], strides = [1, 1]} : vector<32x80xf32> to vector<32x78xf32>
    %cst_16 = arith.constant 0.000000e+00 : f32
    %61 = vector.broadcast %cst_16 : f32 to vector<32x2xf32>
    %62 = tpu.concatenate %60, %61 in 1 : vector<32x78xf32>, vector<32x2xf32> -> vector<32x80xf32>
    %63 = tpu.concatenate %56, %59, %62 in 0 : vector<32x80xf32>, vector<32x80xf32>, vector<32x80xf32> -> vector<96x80xf32>
    %c176 = arith.constant 176 : index
    %c0_17 = arith.constant 0 : index
    %64 = vector.load %arg1[%c176, %c0_17] : memref<400x256xf32, #tpu.memory_space<vmem>>, vector<32x96xf32>
    %cst_18 = arith.constant dense<0.000000e+00> : vector<32x80xf32>
    %65 = tpu.matmul %64, %63, %cst_18 {dimension_numbers = #tpu.dot_dimension_numbers<[1], [0], [0], [1], [0, 0, 1, 1], [], []>} : vector<32x96xf32>, vector<96x80xf32>, vector<32x80xf32> -> vector<32x80xf32>
    %c208 = arith.constant 208 : index
    %c0_19 = arith.constant 0 : index
    %66 = vector.load %arg1[%c208, %c0_19] : memref<400x256xf32, #tpu.memory_space<vmem>>, vector<32x1xf32>
    %67 = vector.broadcast %66 : vector<32x1xf32> to vector<32x80xf32>
    %68 = arith.addf %65, %67 : vector<32x80xf32>
    %cst_20 = arith.constant 0.000000e+00 : f32
    %69 = vector.broadcast %cst_20 : f32 to vector<32x80xf32>
    %70 = arith.cmpf oge, %68, %69 : vector<32x80xf32>
    %cst_21 = arith.constant 2.000000e-01 : f32
    %71 = vector.broadcast %cst_21 : f32 to vector<32x80xf32>
    %72 = arith.mulf %71, %68 : vector<32x80xf32>
    %73 = arith.select %70, %68, %72 : vector<32x80xi1>, vector<32x80xf32>
    %74 = vector.extract_strided_slice %73 {offsets = [0, 1], sizes = [32, 79], strides = [1, 1]} : vector<32x80xf32> to vector<32x79xf32>
    %cst_22 = arith.constant 0.000000e+00 : f32
    %75 = vector.broadcast %cst_22 : f32 to vector<32x1xf32>
    %76 = tpu.concatenate %74, %75 in 1 : vector<32x79xf32>, vector<32x1xf32> -> vector<32x80xf32>
    %77 = vector.extract_strided_slice %73 {offsets = [0, 2], sizes = [32, 78], strides = [1, 1]} : vector<32x80xf32> to vector<32x78xf32>
    %cst_23 = arith.constant 0.000000e+00 : f32
    %78 = vector.broadcast %cst_23 : f32 to vector<32x2xf32>
    %79 = tpu.concatenate %77, %78 in 1 : vector<32x78xf32>, vector<32x2xf32> -> vector<32x80xf32>
    %80 = tpu.concatenate %73, %76, %79 in 0 : vector<32x80xf32>, vector<32x80xf32>, vector<32x80xf32> -> vector<96x80xf32>
    %c240 = arith.constant 240 : index
    %c0_24 = arith.constant 0 : index
    %81 = vector.load %arg1[%c240, %c0_24] : memref<400x256xf32, #tpu.memory_space<vmem>>, vector<64x96xf32>
    %cst_25 = arith.constant dense<0.000000e+00> : vector<64x80xf32>
    %82 = tpu.matmul %81, %80, %cst_25 {dimension_numbers = #tpu.dot_dimension_numbers<[1], [0], [0], [1], [0, 0, 1, 1], [], []>} : vector<64x96xf32>, vector<96x80xf32>, vector<64x80xf32> -> vector<64x80xf32>
    %c304 = arith.constant 304 : index
    %c0_26 = arith.constant 0 : index
    %83 = vector.load %arg1[%c304, %c0_26] : memref<400x256xf32, #tpu.memory_space<vmem>>, vector<64x1xf32>
    %84 = vector.broadcast %83 : vector<64x1xf32> to vector<64x80xf32>
    %85 = arith.addf %82, %84 : vector<64x80xf32>
    %86 = vector.extract_strided_slice %85 {offsets = [0, 1], sizes = [64, 79], strides = [1, 1]} : vector<64x80xf32> to vector<64x79xf32>
    %cst_27 = arith.constant 0.000000e+00 : f32
    %87 = vector.broadcast %cst_27 : f32 to vector<64x1xf32>
    %88 = tpu.concatenate %86, %87 in 1 : vector<64x79xf32>, vector<64x1xf32> -> vector<64x80xf32>
    %89 = vector.extract_strided_slice %85 {offsets = [0, 2], sizes = [64, 78], strides = [1, 1]} : vector<64x80xf32> to vector<64x78xf32>
    %cst_28 = arith.constant 0.000000e+00 : f32
    %90 = vector.broadcast %cst_28 : f32 to vector<64x2xf32>
    %91 = tpu.concatenate %89, %90 in 1 : vector<64x78xf32>, vector<64x2xf32> -> vector<64x80xf32>
    %92 = tpu.concatenate %85, %88, %91 in 0 : vector<64x80xf32>, vector<64x80xf32>, vector<64x80xf32> -> vector<192x80xf32>
    %c368 = arith.constant 368 : index
    %c0_29 = arith.constant 0 : index
    %93 = vector.load %arg1[%c368, %c0_29] : memref<400x256xf32, #tpu.memory_space<vmem>>, vector<16x192xf32>
    %cst_30 = arith.constant dense<0.000000e+00> : vector<16x80xf32>
    %94 = tpu.matmul %93, %92, %cst_30 {dimension_numbers = #tpu.dot_dimension_numbers<[1], [0], [0], [1], [0, 0, 1, 1], [], []>} : vector<16x192xf32>, vector<192x80xf32>, vector<16x80xf32> -> vector<16x80xf32>
    %c384 = arith.constant 384 : index
    %c0_31 = arith.constant 0 : index
    %95 = vector.load %arg1[%c384, %c0_31] : memref<400x256xf32, #tpu.memory_space<vmem>>, vector<16x1xf32>
    %96 = vector.broadcast %95 : vector<16x1xf32> to vector<16x80xf32>
    %97 = arith.addf %94, %96 : vector<16x80xf32>
    %98 = tpu.transpose %97, [1, 0] : vector<16x80xf32> -> vector<80x16xf32>
    %99 = vector.extract_strided_slice %98 {offsets = [0, 0], sizes = [34, 16], strides = [1, 1]} : vector<80x16xf32> to vector<34x16xf32>
    %c0_32 = arith.constant 0 : index
    %c0_33 = arith.constant 0 : index
    %c0_34 = arith.constant 0 : index
    %100 = vector.load %arg2[%c0_32, %c0_33, %c0_34] : memref<2x34x16xf32, #tpu.memory_space<vmem>>, vector<1x34x16xf32>
    %101 = vector.shape_cast %100 : vector<1x34x16xf32> to vector<34x16xf32>
    %102 = vector.shape_cast %99 : vector<34x16xf32> to vector<1x34x16xf32>
    tpu.vector_store %arg2[%c0_32, %c0_33, %c0_34], %102 {strides = array<i32>} : memref<2x34x16xf32, #tpu.memory_space<vmem>>, vector<1x34x16xf32>,
    %103 = vector.extract_strided_slice %98 {offsets = [40, 0], sizes = [34, 16], strides = [1, 1]} : vector<80x16xf32> to vector<34x16xf32>
    %c1 = arith.constant 1 : index
    %c0_35 = arith.constant 0 : index
    %c0_36 = arith.constant 0 : index
    %104 = vector.load %arg2[%c1, %c0_35, %c0_36] : memref<2x34x16xf32, #tpu.memory_space<vmem>>, vector<1x34x16xf32>
    %105 = vector.shape_cast %104 : vector<1x34x16xf32> to vector<34x16xf32>
    %106 = vector.shape_cast %103 : vector<34x16xf32> to vector<1x34x16xf32>
    tpu.vector_store %arg2[%c1, %c0_35, %c0_36], %106 {strides = array<i32>} : memref<2x34x16xf32, #tpu.memory_space<vmem>>, vector<1x34x16xf32>,
    return
  }
}

</mosaic_0001>

<llo_original>
// kernel: fwd.1
$region0: #{fwd.1}
  #allocation0 [shape = 'u32[]', space=smem, size = 0x4, offset = 0x4, fixed_abs, tag = 'smem constant byte address 0x4 - core index']
  #allocation1 [shape = 'u32[144,128]{1,0:T(1,128)}', space=vmem, size = 0x12000, scoped, tag = 'internal scratch']
  %s0 = inlined_call_operand.hbm [shape: f32[2,32], index: 0, kind: input, shape index: {}]
  %s1 = inlined_call_operand.hbm [shape: f32[400,256], index: 1, kind: input, shape index: {}]
  %s2 = inlined_call_operand.vmem [shape: f32[2,34,16], index: 2, kind: output, shape index: {}]
  %s3 = sld [smem:[#allocation0]]
  $region26: #{fwd.1} parent=0
    _
  %s5 = ssub.s32 1, %s3
  %s6 = scalar_select 0, %s5, %s3
  $region1: #{fwd.1} parent=0
    #allocation2 [shape = 'u8[1024]{0}', space=vmem, size = 0x400, scoped, tag = 'input window, operand 0, single buffered']
    #allocation3 [shape = 's32[1]{0}', space=sflag, size = 0x4, scoped, tag = 'scoped memory for fwd.1']
    #allocation4 [shape = 'u8[409600]{0}', space=vmem, size = 0x64000, scoped, tag = 'input window, operand 1, single buffered']
    #allocation5 [shape = 's32[1]{0}', space=sflag, size = 0x4, scoped, tag = 'scoped memory for fwd.1']
    %7 = vsyncpa [#allocation3], 0
    %8 = vsyncpa [#allocation5], 0
    // Predicated region
    $region2: #{fwd.1} parent=1 // pred_check
      _
    $region3: #{fwd.1} parent=1 // pred_check_branch
      %10 = sbr.rel (0) target = $region5
    $region4: #{fwd.1} parent=1 // pred_region
      %s12 = ssub.s32 32, 32
      %13 = vsyncadd [#allocation3], %s12
      %s15 = sshll.u32 [#allocation2], 4
      %s16 = int_to_ptr.vmem [resolvable:$true] %s15
      %18 = dma.hbm_to_vmem [thread:$0]  %s0, 32, %s16, [#allocation3]
    $region5: #{fwd.1} parent=1 // pred_fallthru
      _
    // Predicated region
    $region6: #{fwd.1} parent=1 // pred_check
      _
    $region7: #{fwd.1} parent=1 // pred_check_branch
      %20 = sbr.rel (0) target = $region9
    $region8: #{fwd.1} parent=1 // pred_region
      %s22 = ssub.s32 12800, 12800
      %23 = vsyncadd [#allocation5], %s22
      %s24 = sshll.u32 [#allocation4], 4
      %s25 = int_to_ptr.vmem [resolvable:$true] %s24
      %30 = dma.hbm_to_vmem [thread:$0]  %s1, 12800, %s25, [#allocation5], 256, 256, 16
    $region9: #{fwd.1} parent=1 // pred_fallthru
      _
    // Predicated region
    $region10: #{fwd.1} parent=1 // pred_check
      _
    $region11: #{fwd.1} parent=1 // pred_check_branch
      %32 = sbr.rel (0) target = $region13
    $region12: #{fwd.1} parent=1 // pred_region
      %33 = dma.done [#allocation3], 32
    $region13: #{fwd.1} parent=1 // pred_fallthru
      _
    // Predicated region
    $region14: #{fwd.1} parent=1 // pred_check
      _
    $region15: #{fwd.1} parent=1 // pred_check_branch
      %35 = sbr.rel (0) target = $region17
    $region16: #{fwd.1} parent=1 // pred_region
      %36 = dma.done [#allocation5], 12800
    $region17: #{fwd.1} parent=1 // pred_fallthru
      _
    %v37 = vld [vmem:[#allocation2] sm:$0x3]
    %v38 = vld [vmem:[#allocation4] sm:$0xff]
    %v39 = vld [vmem:[#allocation4 + $0x10] sm:$0xff]
    %v40 = vld [vmem:[#allocation4 + $0x20] sm:$0xff]
    %v41 = vld [vmem:[#allocation4 + $0x30] sm:$0xff]
    %v42 = vld [vmem:[#allocation4 + $0x40] ss:$0 sm:$0xff]
    %vm43 = vcmask 261120
    %v45 = vsel %vm43, %v37, 0
    %47 = vmatprep.subr.mxu0 0.0
    %48 = vmatpush1.msra.mxu0 %v38
    %49 = vmatprep.subr.mxu0 0.0
    %50 = vmatpush1.msra.mxu0 %v39
    %51 = vmatprep.subr.mxu0 0.0
    %52 = vmatpush1.msra.mxu0 %v40
    %53 = vmatprep.subr.mxu0 0.0
    %54 = vmatpush1.msra.mxu0 %v41
    %55 = vmatprep.subr.mxu0 0.0
    %56 = vmatpush1.msra.mxu0 0.0
    %57 = vmatprep.subr.mxu0 0.0
    %58 = vmatpush1.msra.mxu0 0.0
    %59 = vmatprep.subr.mxu0 0.0
    %60 = vmatpush1.msra.mxu0 0.0
    %61 = vmatprep.subr.mxu0 0.0
    %62 = vmatpush1.msra.mxu0 0.0
    %63 = vmatprep.subr.mxu0 0.0
    %64 = vmatpush1.msra.mxu0 0.0
    %65 = vmatprep.subr.mxu0 0.0
    %66 = vmatpush1.msra.mxu0 0.0
    %67 = vmatprep.subr.mxu0 0.0
    %68 = vmatpush1.msra.mxu0 0.0
    %69 = vmatprep.subr.mxu0 0.0
    %70 = vmatpush1.msra.mxu0 0.0
    %71 = vmatprep.subr.mxu0 0.0
    %72 = vmatpush1.msra.mxu0 0.0
    %73 = vmatprep.subr.mxu0 0.0
    %74 = vmatpush1.msra.mxu0 0.0
    %75 = vmatprep.subr.mxu0 0.0
    %76 = vmatpush1.msra.mxu0 0.0
    %77 = vmatprep.subr.mxu0 0.0
    %78 = vmatpush1.msra.mxu0 0.0
    %79 = vmatprep.subr.mxu0 0.0
    %80 = vmatpush1.msra.mxu0 0.0
    %81 = vmatprep.subr.mxu0 0.0
    %82 = vmatpush1.msra.mxu0 0.0
    %83 = vmatprep.subr.mxu0 0.0
    %84 = vmatpush1.msra.mxu0 0.0
    %85 = vmatprep.subr.mxu0 0.0
    %86 = vmatpush1.msra.mxu0 0.0
    %87 = vmatprep.subr.mxu0 0.0
    %88 = vmatpush1.msra.mxu0 0.0
    %89 = vmatprep.subr.mxu0 0.0
    %90 = vmatpush1.msra.mxu0 0.0
    %91 = vmatprep.subr.mxu0 0.0
    %92 = vmatpush1.msra.mxu0 0.0
    %93 = vmatprep.subr.mxu0 0.0
    %94 = vmatpush1.msra.mxu0 0.0
    %95 = vmatprep.subr.mxu0 0.0
    %96 = vmatpush1.msra.mxu0 0.0
    %97 = vmatprep.subr.mxu0 0.0
    %98 = vmatpush1.msra.mxu0 0.0
    %99 = vmatprep.subr.mxu0 0.0
    %100 = vmatpush1.msra.mxu0 0.0
    %101 = vmatprep.subr.mxu0 0.0
    %102 = vmatpush1.msra.mxu0 0.0
    %103 = vmatprep.subr.mxu0 0.0
    %104 = vmatpush1.msra.mxu0 0.0
    %105 = vmatprep.subr.mxu0 0.0
    %106 = vmatpush1.msra.mxu0 0.0
    %107 = vmatprep.subr.mxu0 0.0
    %108 = vmatpush1.msra.mxu0 0.0
    %109 = vmatprep.subr.mxu0 0.0
    %110 = vmatpush1.msra.mxu0 0.0
    %111 = vmatprep.mubr.f32.mxu0 0.0
    %112 = vmatmul.mubr.f32.gmra.mrb[0].mxu0 %v45
    %v113 = vpop.f32.mrb[0].mxu0
    %v114 = vadd.f32 %v42, %v113
    %v115 = vpop.f32.mrb[0].mxu0
    %116 = vdwg.mxu0
    %v117 = vld [vmem:[#allocation4 + $0x50] sm:$0xff]
    %v118 = vld [vmem:[#allocation4 + $0x58] sm:$0xff]
    %v119 = vld [vmem:[#allocation4 + $0x60] sm:$0xff]
    %v120 = vld [vmem:[#allocation4 + $0x68] sm:$0xff]
    %v121 = vld [vmem:[#allocation4 + $0x70] sm:$0xff]
    %v122 = vld [vmem:[#allocation4 + $0x78] sm:$0xff]
    %v123 = vld [vmem:[#allocation4 + $0x80] sm:$0xff]
    %v124 = vld [vmem:[#allocation4 + $0x88] sm:$0xff]
    %v125 = vld [vmem:[#allocation4 + $0x90] sm:$0xff]
    %v126 = vld [vmem:[#allocation4 + $0x98] sm:$0xff]
    %v127 = vld [vmem:[#allocation4 + $0xa0] sm:$0xff]
    %v128 = vld [vmem:[#allocation4 + $0xa8] sm:$0xff]
    %v129 = vld [vmem:[#allocation4 + $0xb0] sm:$0xff]
    %v130 = vld [vmem:[#allocation4 + $0xb8] sm:$0xff]
    %v131 = vld [vmem:[#allocation4 + $0xc0] sm:$0xff]
    %v132 = vld [vmem:[#allocation4 + $0xc8] sm:$0xff]
    %s133 = scalar_lea.vmem [#allocation4], 208
    %v134 = vld [vmem:[%s133] ss:$8 sm:$0x3]
    %v136 = vlaneseq
    %v137 = vshrl.u32 %v136, 7
    %v138 = vsub.s32 0, %v137
    %v139 = vrot.slane %v134, %v138
    %v140 = vlaneseq
    %v141 = vshrl.u32 %v140, 7
    %v142 = vsub.s32 1, %v141
    %v143 = vrot.slane %v134, %v142
    %vm146 = vcmask 523264
    %v148 = vsel %vm146, %v114, 0
    %150 = vmatprep.subr.mxu0 %v118
    %151 = vmatpush1.msra.mxu0 %v117
    %152 = vmatprep.subr.mxu0 %v120
    %153 = vmatpush1.msra.mxu0 %v119
    %154 = vmatprep.subr.mxu0 %v122
    %155 = vmatpush1.msra.mxu0 %v121
    %156 = vmatprep.subr.mxu0 %v124
    %157 = vmatpush1.msra.mxu0 %v123
    %158 = vmatprep.subr.mxu0 %v126
    %159 = vmatpush1.msra.mxu0 %v125
    %160 = vmatprep.subr.mxu0 %v128
    %161 = vmatpush1.msra.mxu0 %v127
    %162 = vmatprep.subr.mxu0 %v130
    %163 = vmatpush1.msra.mxu0 %v129
    %164 = vmatprep.subr.mxu0 %v132
    %165 = vmatpush1.msra.mxu0 %v131
    %166 = vmatprep.subr.mxu0 0.0
    %167 = vmatpush1.msra.mxu0 0.0
    %168 = vmatprep.subr.mxu0 0.0
    %169 = vmatpush1.msra.mxu0 0.0
    %170 = vmatprep.subr.mxu0 0.0
    %171 = vmatpush1.msra.mxu0 0.0
    %172 = vmatprep.subr.mxu0 0.0
    %173 = vmatpush1.msra.mxu0 0.0
    %174 = vmatprep.subr.mxu0 0.0
    %175 = vmatpush1.msra.mxu0 0.0
    %176 = vmatprep.subr.mxu0 0.0
    %177 = vmatpush1.msra.mxu0 0.0
    %178 = vmatprep.subr.mxu0 0.0
    %179 = vmatpush1.msra.mxu0 0.0
    %180 = vmatprep.subr.mxu0 0.0
    %181 = vmatpush1.msra.mxu0 0.0
    %182 = vmatprep.subr.mxu0 0.0
    %183 = vmatpush1.msra.mxu0 0.0
    %184 = vmatprep.subr.mxu0 0.0
    %185 = vmatpush1.msra.mxu0 0.0
    %186 = vmatprep.subr.mxu0 0.0
    %187 = vmatpush1.msra.mxu0 0.0
    %188 = vmatprep.subr.mxu0 0.0
    %189 = vmatpush1.msra.mxu0 0.0
    %190 = vmatprep.subr.mxu0 0.0
    %191 = vmatpush1.msra.mxu0 0.0
    %192 = vmatprep.subr.mxu0 0.0
    %193 = vmatpush1.msra.mxu0 0.0
    %194 = vmatprep.subr.mxu0 0.0
    %195 = vmatpush1.msra.mxu0 0.0
    %196 = vmatprep.subr.mxu0 0.0
    %197 = vmatpush1.msra.mxu0 0.0
    %198 = vmatprep.subr.mxu0 0.0
    %199 = vmatpush1.msra.mxu0 0.0
    %200 = vmatprep.subr.mxu0 0.0
    %201 = vmatpush1.msra.mxu0 0.0
    %202 = vmatprep.subr.mxu0 0.0
    %203 = vmatpush1.msra.mxu0 0.0
    %204 = vmatprep.subr.mxu0 0.0
    %205 = vmatpush1.msra.mxu0 0.0
    %206 = vmatprep.subr.mxu0 0.0
    %207 = vmatpush1.msra.mxu0 0.0
    %208 = vmatprep.subr.mxu0 0.0
    %209 = vmatpush1.msra.mxu0 0.0
    %210 = vmatprep.subr.mxu0 0.0
    %211 = vmatpush1.msra.mxu0 0.0
    %212 = vmatprep.subr.mxu0 0.0
    %213 = vmatpush1.msra.mxu0 0.0
    %214 = vmatprep.mubr.f32.mxu0 0.0
    %215 = vmatmul.mubr.f32.gmra.mrb[0].mxu0 %v148
    %v216 = vpop.f32.mrb[0].mxu0
    %v217 = vadd.f32 %v139, %v216
    %v218 = vpop.f32.mrb[0].mxu0
    %v219 = vadd.f32 %v143, %v218
    %220 = vdwg.mxu0
    %v222 = vrot.slane %v217, 1
    %223 = vrot.lane.b32.xlu0 %v222, 40
    %v224 = vpop.permute.xlu0 %223
    %vm226 = vcmask 326656
    %v227 = vsel %vm226, %v217, %v224
    %228 = vrot.lane.b32.xlu0 %v217, 88
    %v229 = vpop.permute.xlu0 %228
    %v232 = vsel %vm226, %v229, %v222
    %233 = vrot.lane.b32.xlu0 %v217, 48
    %v234 = vpop.permute.xlu0 %233
    %236 = vrot.lane.b32.xlu0 %v222, 88
    %v237 = vpop.permute.xlu0 %236
    %v239 = vsel %vm226, %v234, %v237
    %241 = vrot.lane.b32.xlu0 %v217, 8
    %v242 = vpop.permute.xlu0 %241
    %243 = vrot.lane.b32.xlu0 %v219, 8
    %v244 = vpop.permute.xlu0 %243
    %vm245 = vcmask 64512
    %v246 = vsel %vm245, %v242, %v244
    %v248 = vrot.slane %v219, 1
    %249 = vrot.lane.b32.xlu0 %v222, 48
    %v250 = vpop.permute.xlu0 %249
    %251 = vrot.lane.b32.xlu0 %v248, 48
    %v252 = vpop.permute.xlu0 %251
    %vm253 = vcmask 392192
    %v254 = vsel %vm253, %v250, %v252
    %v256 = vsel %vm226, %v246, %v254
    %v258 = vrot.slane %v232, 7
    %v261 = vrot.slane %v239, 6
    %v264 = vrot.slane %v256, 5
    %vm266 = vcmask 1040384
    %v267 = vsel %vm266, %v227, %v258
    %vm268 = vcmask 1041408
    %v269 = vsel %vm268, %v267, %v261
    %vm270 = vcmask 1042432
    %v271 = vsel %vm270, %v269, %v264
    %273 = vrot.lane.b32.xlu0 %v271, 127
    %v274 = vpop.permute.xlu0 %273
    %vm276 = vcmask 646144
    %v277 = vsel %vm276, %v274, 0.0
    %278 = vrot.lane.b32.xlu0 %v271, 126
    %v279 = vpop.permute.xlu0 %278
    %vm281 = vcmask 637952
    %v282 = vsel %vm281, %v279, 0.0
    %v284 = vrot.slane %v277, 4
    %vm286 = vcmask 1043456
    %v287 = vsel %vm286, %v271, %v284
    %v288 = vld [vmem:[#allocation4 + $0xe0] sm:$0xff]
    %v289 = vld [vmem:[#allocation4 + $0xf0] sm:$0xff]
    %v290 = vld [vmem:[#allocation4 + $0x100] sm:$0xff]
    %v291 = vld [vmem:[#allocation4 + $0x110] sm:$0xff]
    %v292 = vld [vmem:[#allocation4 + $0x120] sm:$0xff]
    %v293 = vld [vmem:[#allocation4 + $0x130] sm:$0xff]
    %v294 = vld [vmem:[#allocation4 + $0x140] sm:$0xff]
    %v295 = vld [vmem:[#allocation4 + $0x150] sm:$0xff]
    %297 = vset.pattern.permute.xlu0 0
    %298 = vperm.xlu0 %297, %v292
    %v299 = vpop.permute.xlu0 %298
    %302 = vset.pattern.permute.xlu0 0
    %303 = vperm.xlu0 %302, %v293
    %v304 = vpop.permute.xlu0 %303
    %307 = vset.pattern.permute.xlu0 0
    %308 = vperm.xlu0 %307, %v294
    %v309 = vpop.permute.xlu0 %308
    %312 = vset.pattern.permute.xlu0 0
    %313 = vperm.xlu0 %312, %v295
    %v314 = vpop.permute.xlu0 %313
    %vm316 = vcmask 97280
    %v318 = vsel %vm316, %v288, 0
    %v321 = vsel %vm316, %v289, 0
    %v324 = vsel %vm316, %v290, 0
    %v327 = vsel %vm316, %v291, 0
    %v330 = vsel %vm286, %v282, 0
    %332 = vmatprep.subr.mxu0 0.0
    %333 = vmatpush1.msra.mxu0 %v287
    %334 = vmatprep.subr.mxu0 0.0
    %335 = vmatpush1.msra.mxu0 %v330
    %336 = vmatprep.subr.mxu0 0.0
    %337 = vmatpush1.msra.mxu0 0.0
    %338 = vmatprep.subr.mxu0 0.0
    %339 = vmatpush1.msra.mxu0 0.0
    %340 = vmatprep.subr.mxu0 0.0
    %341 = vmatpush1.msra.mxu0 0.0
    %342 = vmatprep.subr.mxu0 0.0
    %343 = vmatpush1.msra.mxu0 0.0
    %344 = vmatprep.subr.mxu0 0.0
    %345 = vmatpush1.msra.mxu0 0.0
    %346 = vmatprep.subr.mxu0 0.0
    %347 = vmatpush1.msra.mxu0 0.0
    %348 = vmatprep.subr.mxu0 0.0
    %349 = vmatpush1.msra.mxu0 0.0
    %350 = vmatprep.subr.mxu0 0.0
    %351 = vmatpush1.msra.mxu0 0.0
    %352 = vmatprep.subr.mxu0 0.0
    %353 = vmatpush1.msra.mxu0 0.0
    %354 = vmatprep.subr.mxu0 0.0
    %355 = vmatpush1.msra.mxu0 0.0
    %356 = vmatprep.subr.mxu0 0.0
    %357 = vmatpush1.msra.mxu0 0.0
    %358 = vmatprep.subr.mxu0 0.0
    %359 = vmatpush1.msra.mxu0 0.0
    %360 = vmatprep.subr.mxu0 0.0
    %361 = vmatpush1.msra.mxu0 0.0
    %362 = vmatprep.subr.mxu0 0.0
    %363 = vmatpush1.msra.mxu0 0.0
    %364 = vmatprep.subr.mxu0 0.0
    %365 = vmatpush1.msra.mxu0 0.0
    %366 = vmatprep.subr.mxu0 0.0
    %367 = vmatpush1.msra.mxu0 0.0
    %368 = vmatprep.subr.mxu0 0.0
    %369 = vmatpush1.msra.mxu0 0.0
    %370 = vmatprep.subr.mxu0 0.0
    %371 = vmatpush1.msra.mxu0 0.0
    %372 = vmatprep.subr.mxu0 0.0
    %373 = vmatpush1.msra.mxu0 0.0
    %374 = vmatprep.subr.mxu0 0.0
    %375 = vmatpush1.msra.mxu0 0.0
    %376 = vmatprep.subr.mxu0 0.0
    %377 = vmatpush1.msra.mxu0 0.0
    %378 = vmatprep.subr.mxu0 0.0
    %379 = vmatpush1.msra.mxu0 0.0
    %380 = vmatprep.subr.mxu0 0.0
    %381 = vmatpush1.msra.mxu0 0.0
    %382 = vmatprep.subr.mxu0 0.0
    %383 = vmatpush1.msra.mxu0 0.0
    %384 = vmatprep.subr.mxu0 0.0
    %385 = vmatpush1.msra.mxu0 0.0
    %386 = vmatprep.subr.mxu0 0.0
    %387 = vmatpush1.msra.mxu0 0.0
    %388 = vmatprep.subr.mxu0 0.0
    %389 = vmatpush1.msra.mxu0 0.0
    %390 = vmatprep.subr.mxu0 0.0
    %391 = vmatpush1.msra.mxu0 0.0
    %392 = vmatprep.subr.mxu0 0.0
    %393 = vmatpush1.msra.mxu0 0.0
    %394 = vmatprep.subr.mxu0 0.0
    %395 = vmatpush1.msra.mxu0 0.0
    %396 = vmatprep.mubr.f32.mxu0 0.0
    %397 = vmatmul.mubr.f32.gmra.mrb[0].mxu0 %v318
    %v398 = vpop.f32.mrb[0].mxu0
    %v399 = vadd.f32 %v299, %v398
    %v400 = vpop.f32.mrb[0].mxu0
    %401 = vmatprep.mubr.f32.mxu0 0.0
    %402 = vmatmul.mubr.f32.gmra.mrb[0].mxu0 %v321
    %v403 = vpop.f32.mrb[0].mxu0
    %v404 = vadd.f32 %v304, %v403
    %v405 = vpop.f32.mrb[0].mxu0
    %406 = vmatprep.mubr.f32.mxu0 0.0
    %407 = vmatmul.mubr.f32.gmra.mrb[0].mxu0 %v324
    %v408 = vpop.f32.mrb[0].mxu0
    %v409 = vadd.f32 %v309, %v408
    %v410 = vpop.f32.mrb[0].mxu0
    %411 = vmatprep.mubr.f32.mxu0 0.0
    %412 = vmatmul.mubr.f32.gmra.mrb[0].mxu0 %v327
    %v413 = vpop.f32.mrb[0].mxu0
    %v414 = vadd.f32 %v314, %v413
    %v415 = vpop.f32.mrb[0].mxu0
    %416 = vdwg.mxu0
    %vm417 = vcmp.ge.f32.partialorder %v399, 0.0
    %vm418 = vcmp.ge.f32.partialorder %v404, 0.0
    %vm419 = vcmp.ge.f32.partialorder %v409, 0.0
    %vm420 = vcmp.ge.f32.partialorder %v414, 0.0
    %v421 = vmul.f32 %v399, 0.2
    %v422 = vmul.f32 %v404, 0.2
    %v423 = vmul.f32 %v409, 0.2
    %v424 = vmul.f32 %v414, 0.2
    %v425 = vsel %vm417, %v399, %v421
    %v426 = vsel %vm418, %v404, %v422
    %v427 = vsel %vm419, %v409, %v423
    %v428 = vsel %vm420, %v414, %v424
    %v429 = vlaneseq
    %v430 = vand.u32 %v429, 127
    %vm431 = vcmp.ge.s32.totalorder %v430, 2
    %vm432 = vcmp.lt.s32.totalorder %v430, 38
    %vm433 = vmand %vm431, %vm432
    %vm434 = vcmp.ge.s32.totalorder %v430, 42
    %vm435 = vcmp.lt.s32.totalorder %v430, 78
    %vm436 = vmand %vm434, %vm435
    %vm437 = vmor %vm433, %vm436
    %v438 = vsel %vm437, 1, 0
    %vm439 = vcmp.eq.s32.totalorder %v438, 1
    %v440 = vsel %vm439, %v425, 0.0
    %v441 = vsel %vm439, %v426, 0.0
    %v442 = vsel %vm439, %v427, 0.0
    %v443 = vsel %vm439, %v428, 0.0
    %448 = vrot.lane.b32.xlu0 %v440, 127
    %v449 = vpop.permute.xlu0 %448
    %450 = vrot.lane.b32.xlu0 %v441, 127
    %v451 = vpop.permute.xlu0 %450
    %452 = vrot.lane.b32.xlu0 %v442, 127
    %v453 = vpop.permute.xlu0 %452
    %454 = vrot.lane.b32.xlu0 %v443, 127
    %v455 = vpop.permute.xlu0 %454
    %v460 = vsel %vm276, %v449, 0.0
    %v461 = vsel %vm276, %v451, 0.0
    %v462 = vsel %vm276, %v453, 0.0
    %v463 = vsel %vm276, %v455, 0.0
    %464 = vrot.lane.b32.xlu0 %v440, 126
    %v465 = vpop.permute.xlu0 %464
    %466 = vrot.lane.b32.xlu0 %v441, 126
    %v467 = vpop.permute.xlu0 %466
    %468 = vrot.lane.b32.xlu0 %v442, 126
    %v469 = vpop.permute.xlu0 %468
    %470 = vrot.lane.b32.xlu0 %v443, 126
    %v471 = vpop.permute.xlu0 %470
    %v476 = vsel %vm281, %v465, 0.0
    %v477 = vsel %vm281, %v467, 0.0
    %v478 = vsel %vm281, %v469, 0.0
    %v479 = vsel %vm281, %v471, 0.0
    %v480 = vld [vmem:[#allocation4 + $0x160] sm:$0xff]
    %v481 = vld [vmem:[#allocation4 + $0x170] sm:$0xff]
    %v482 = vld [vmem:[#allocation4 + $0x180] sm:$0xff]
    %v483 = vld [vmem:[#allocation4 + $0x190] sm:$0xff]
    %v484 = vld [vmem:[#allocation4 + $0x1a0] sm:$0xff]
    %v485 = vld [vmem:[#allocation4 + $0x1b0] sm:$0xff]
    %v486 = vld [vmem:[#allocation4 + $0x1c0] sm:$0xff]
    %v487 = vld [vmem:[#allocation4 + $0x1d0] sm:$0xff]
    %489 = vset.pattern.permute.xlu0 0
    %490 = vperm.xlu0 %489, %v484
    %v491 = vpop.permute.xlu0 %490
    %494 = vset.pattern.permute.xlu0 0
    %495 = vperm.xlu0 %494, %v485
    %v496 = vpop.permute.xlu0 %495
    %499 = vset.pattern.permute.xlu0 0
    %500 = vperm.xlu0 %499, %v486
    %v501 = vpop.permute.xlu0 %500
    %504 = vset.pattern.permute.xlu0 0
    %505 = vperm.xlu0 %504, %v487
    %v506 = vpop.permute.xlu0 %505
    %vm508 = vcmask 785408
    %v510 = vsel %vm508, %v480, 0
    %v513 = vsel %vm508, %v481, 0
    %v516 = vsel %vm508, %v482, 0
    %v519 = vsel %vm508, %v483, 0
    %521 = vmatprep.subr.mxu0 0.0
    %522 = vmatpush1.msra.mxu0 %v440
    %523 = vmatprep.subr.mxu0 0.0
    %524 = vmatpush1.msra.mxu0 %v441
    %525 = vmatprep.subr.mxu0 0.0
    %526 = vmatpush1.msra.mxu0 %v442
    %527 = vmatprep.subr.mxu0 0.0
    %528 = vmatpush1.msra.mxu0 %v443
    %529 = vmatprep.subr.mxu0 0.0
    %530 = vmatpush1.msra.mxu0 %v460
    %531 = vmatprep.subr.mxu0 0.0
    %532 = vmatpush1.msra.mxu0 %v461
    %533 = vmatprep.subr.mxu0 0.0
    %534 = vmatpush1.msra.mxu0 %v462
    %535 = vmatprep.subr.mxu0 0.0
    %536 = vmatpush1.msra.mxu0 %v463
    %537 = vmatprep.subr.mxu0 0.0
    %538 = vmatpush1.msra.mxu0 %v476
    %539 = vmatprep.subr.mxu0 0.0
    %540 = vmatpush1.msra.mxu0 %v477
    %541 = vmatprep.subr.mxu0 0.0
    %542 = vmatpush1.msra.mxu0 %v478
    %543 = vmatprep.subr.mxu0 0.0
    %544 = vmatpush1.msra.mxu0 %v479
    %545 = vmatprep.subr.mxu0 0.0
    %546 = vmatpush1.msra.mxu0 0.0
    %547 = vmatprep.subr.mxu0 0.0
    %548 = vmatpush1.msra.mxu0 0.0
    %549 = vmatprep.subr.mxu0 0.0
    %550 = vmatpush1.msra.mxu0 0.0
    %551 = vmatprep.subr.mxu0 0.0
    %552 = vmatpush1.msra.mxu0 0.0
    %553 = vmatprep.subr.mxu0 0.0
    %554 = vmatpush1.msra.mxu0 0.0
    %555 = vmatprep.subr.mxu0 0.0
    %556 = vmatpush1.msra.mxu0 0.0
    %557 = vmatprep.subr.mxu0 0.0
    %558 = vmatpush1.msra.mxu0 0.0
    %559 = vmatprep.subr.mxu0 0.0
    %560 = vmatpush1.msra.mxu0 0.0
    %561 = vmatprep.subr.mxu0 0.0
    %562 = vmatpush1.msra.mxu0 0.0
    %563 = vmatprep.subr.mxu0 0.0
    %564 = vmatpush1.msra.mxu0 0.0
    %565 = vmatprep.subr.mxu0 0.0
    %566 = vmatpush1.msra.mxu0 0.0
    %567 = vmatprep.subr.mxu0 0.0
    %568 = vmatpush1.msra.mxu0 0.0
    %569 = vmatprep.subr.mxu0 0.0
    %570 = vmatpush1.msra.mxu0 0.0
    %571 = vmatprep.subr.mxu0 0.0
    %572 = vmatpush1.msra.mxu0 0.0
    %573 = vmatprep.subr.mxu0 0.0
    %574 = vmatpush1.msra.mxu0 0.0
    %575 = vmatprep.subr.mxu0 0.0
    %576 = vmatpush1.msra.mxu0 0.0
    %577 = vmatprep.subr.mxu0 0.0
    %578 = vmatpush1.msra.mxu0 0.0
    %579 = vmatprep.subr.mxu0 0.0
    %580 = vmatpush1.msra.mxu0 0.0
    %581 = vmatprep.subr.mxu0 0.0
    %582 = vmatpush1.msra.mxu0 0.0
    %583 = vmatprep.subr.mxu0 0.0
    %584 = vmatpush1.msra.mxu0 0.0
    %585 = vmatprep.mubr.f32.mxu0 0.0
    %586 = vmatmul.mubr.f32.gmra.mrb[0].mxu0 %v510
    %v587 = vpop.f32.mrb[0].mxu0
    %v588 = vadd.f32 %v491, %v587
    %v589 = vpop.f32.mrb[0].mxu0
    %590 = vmatprep.mubr.f32.mxu0 0.0
    %591 = vmatmul.mubr.f32.gmra.mrb[0].mxu0 %v513
    %v592 = vpop.f32.mrb[0].mxu0
    %v593 = vadd.f32 %v496, %v592
    %v594 = vpop.f32.mrb[0].mxu0
    %595 = vmatprep.mubr.f32.mxu0 0.0
    %596 = vmatmul.mubr.f32.gmra.mrb[0].mxu0 %v516
    %v597 = vpop.f32.mrb[0].mxu0
    %v598 = vadd.f32 %v501, %v597
    %v599 = vpop.f32.mrb[0].mxu0
    %600 = vmatprep.mubr.f32.mxu0 0.0
    %601 = vmatmul.mubr.f32.gmra.mrb[0].mxu0 %v519
    %v602 = vpop.f32.mrb[0].mxu0
    %v603 = vadd.f32 %v506, %v602
    %v604 = vpop.f32.mrb[0].mxu0
    %605 = vdwg.mxu0
    %vm606 = vcmp.ge.f32.partialorder %v588, 0.0
    %vm607 = vcmp.ge.f32.partialorder %v593, 0.0
    %vm608 = vcmp.ge.f32.partialorder %v598, 0.0
    %vm609 = vcmp.ge.f32.partialorder %v603, 0.0
    %v610 = vmul.f32 %v588, 0.2
    %v611 = vmul.f32 %v593, 0.2
    %v612 = vmul.f32 %v598, 0.2
    %v613 = vmul.f32 %v603, 0.2
    %v614 = vsel %vm606, %v588, %v610
    %v615 = vsel %vm607, %v593, %v611
    %v616 = vsel %vm608, %v598, %v612
    %v617 = vsel %vm609, %v603, %v613
    %622 = vrot.lane.b32.xlu0 %v614, 127
    %v623 = vpop.permute.xlu0 %622
    %624 = vrot.lane.b32.xlu0 %v615, 127
    %v625 = vpop.permute.xlu0 %624
    %626 = vrot.lane.b32.xlu0 %v616, 127
    %v627 = vpop.permute.xlu0 %626
    %628 = vrot.lane.b32.xlu0 %v617, 127
    %v629 = vpop.permute.xlu0 %628
    %v634 = vsel %vm276, %v623, 0.0
    %v635 = vsel %vm276, %v625, 0.0
    %v636 = vsel %vm276, %v627, 0.0
    %v637 = vsel %vm276, %v629, 0.0
    %638 = vrot.lane.b32.xlu0 %v614, 126
    %v639 = vpop.permute.xlu0 %638
    %640 = vrot.lane.b32.xlu0 %v615, 126
    %v641 = vpop.permute.xlu0 %640
    %642 = vrot.lane.b32.xlu0 %v616, 126
    %v643 = vpop.permute.xlu0 %642
    %644 = vrot.lane.b32.xlu0 %v617, 126
    %v645 = vpop.permute.xlu0 %644
    %v650 = vsel %vm281, %v639, 0.0
    %v651 = vsel %vm281, %v641, 0.0
    %v652 = vsel %vm281, %v643, 0.0
    %v653 = vsel %vm281, %v645, 0.0
    %v654 = vld [vmem:[#allocation4 + $0x1e0] sm:$0xff]
    %v655 = vld [vmem:[#allocation4 + $0x1f0] sm:$0xff]
    %v656 = vld [vmem:[#allocation4 + $0x200] sm:$0xff]
    %v657 = vld [vmem:[#allocation4 + $0x210] sm:$0xff]
    %v658 = vld [vmem:[#allocation4 + $0x220] sm:$0xff]
    %v659 = vld [vmem:[#allocation4 + $0x230] sm:$0xff]
    %v660 = vld [vmem:[#allocation4 + $0x240] sm:$0xff]
    %v661 = vld [vmem:[#allocation4 + $0x250] sm:$0xff]
    %v662 = vld [vmem:[#allocation4 + $0x260] sm:$0xff]
    %v663 = vld [vmem:[#allocation4 + $0x270] sm:$0xff]
    %v664 = vld [vmem:[#allocation4 + $0x280] sm:$0xff]
    %v665 = vld [vmem:[#allocation4 + $0x290] sm:$0xff]
    %v666 = vld [vmem:[#allocation4 + $0x2a0] sm:$0xff]
    %v667 = vld [vmem:[#allocation4 + $0x2b0] sm:$0xff]
    %v668 = vld [vmem:[#allocation4 + $0x2c0] sm:$0xff]
    %v669 = vld [vmem:[#allocation4 + $0x2d0] sm:$0xff]
    %671 = vset.pattern.permute.xlu0 0
    %672 = vperm.xlu0 %671, %v662
    %v673 = vpop.permute.xlu0 %672
    %676 = vset.pattern.permute.xlu0 0
    %677 = vperm.xlu0 %676, %v663
    %v678 = vpop.permute.xlu0 %677
    %681 = vset.pattern.permute.xlu0 0
    %682 = vperm.xlu0 %681, %v664
    %v683 = vpop.permute.xlu0 %682
    %686 = vset.pattern.permute.xlu0 0
    %687 = vperm.xlu0 %686, %v665
    %v688 = vpop.permute.xlu0 %687
    %691 = vset.pattern.permute.xlu0 0
    %692 = vperm.xlu0 %691, %v666
    %v693 = vpop.permute.xlu0 %692
    %696 = vset.pattern.permute.xlu0 0
    %697 = vperm.xlu0 %696, %v667
    %v698 = vpop.permute.xlu0 %697
    %701 = vset.pattern.permute.xlu0 0
    %702 = vperm.xlu0 %701, %v668
    %v703 = vpop.permute.xlu0 %702
    %706 = vset.pattern.permute.xlu0 0
    %707 = vperm.xlu0 %706, %v669
    %v708 = vpop.permute.xlu0 %707
    %v711 = vsel %vm508, %v654, 0
    %v714 = vsel %vm508, %v655, 0
    %v717 = vsel %vm508, %v656, 0
    %v720 = vsel %vm508, %v657, 0
    %v723 = vsel %vm508, %v658, 0
    %v726 = vsel %vm508, %v659, 0
    %v729 = vsel %vm508, %v660, 0
    %v732 = vsel %vm508, %v661, 0
    %734 = vmatprep.subr.mxu0 0.0
    %735 = vmatpush1.msra.mxu0 %v614
    %736 = vmatprep.subr.mxu0 0.0
    %737 = vmatpush1.msra.mxu0 %v615
    %738 = vmatprep.subr.mxu0 0.0
    %739 = vmatpush1.msra.mxu0 %v616
    %740 = vmatprep.subr.mxu0 0.0
    %741 = vmatpush1.msra.mxu0 %v617
    %742 = vmatprep.subr.mxu0 0.0
    %743 = vmatpush1.msra.mxu0 %v634
    %744 = vmatprep.subr.mxu0 0.0
    %745 = vmatpush1.msra.mxu0 %v635
    %746 = vmatprep.subr.mxu0 0.0
    %747 = vmatpush1.msra.mxu0 %v636
    %748 = vmatprep.subr.mxu0 0.0
    %749 = vmatpush1.msra.mxu0 %v637
    %750 = vmatprep.subr.mxu0 0.0
    %751 = vmatpush1.msra.mxu0 %v650
    %752 = vmatprep.subr.mxu0 0.0
    %753 = vmatpush1.msra.mxu0 %v651
    %754 = vmatprep.subr.mxu0 0.0
    %755 = vmatpush1.msra.mxu0 %v652
    %756 = vmatprep.subr.mxu0 0.0
    %757 = vmatpush1.msra.mxu0 %v653
    %758 = vmatprep.subr.mxu0 0.0
    %759 = vmatpush1.msra.mxu0 0.0
    %760 = vmatprep.subr.mxu0 0.0
    %761 = vmatpush1.msra.mxu0 0.0
    %762 = vmatprep.subr.mxu0 0.0
    %763 = vmatpush1.msra.mxu0 0.0
    %764 = vmatprep.subr.mxu0 0.0
    %765 = vmatpush1.msra.mxu0 0.0
    %766 = vmatprep.subr.mxu0 0.0
    %767 = vmatpush1.msra.mxu0 0.0
    %768 = vmatprep.subr.mxu0 0.0
    %769 = vmatpush1.msra.mxu0 0.0
    %770 = vmatprep.subr.mxu0 0.0
    %771 = vmatpush1.msra.mxu0 0.0
    %772 = vmatprep.subr.mxu0 0.0
    %773 = vmatpush1.msra.mxu0 0.0
    %774 = vmatprep.subr.mxu0 0.0
    %775 = vmatpush1.msra.mxu0 0.0
    %776 = vmatprep.subr.mxu0 0.0
    %777 = vmatpush1.msra.mxu0 0.0
    %778 = vmatprep.subr.mxu0 0.0
    %779 = vmatpush1.msra.mxu0 0.0
    %780 = vmatprep.subr.mxu0 0.0
    %781 = vmatpush1.msra.mxu0 0.0
    %782 = vmatprep.subr.mxu0 0.0
    %783 = vmatpush1.msra.mxu0 0.0
    %784 = vmatprep.subr.mxu0 0.0
    %785 = vmatpush1.msra.mxu0 0.0
    %786 = vmatprep.subr.mxu0 0.0
    %787 = vmatpush1.msra.mxu0 0.0
    %788 = vmatprep.subr.mxu0 0.0
    %789 = vmatpush1.msra.mxu0 0.0
    %790 = vmatprep.subr.mxu0 0.0
    %791 = vmatpush1.msra.mxu0 0.0
    %792 = vmatprep.subr.mxu0 0.0
    %793 = vmatpush1.msra.mxu0 0.0
    %794 = vmatprep.subr.mxu0 0.0
    %795 = vmatpush1.msra.mxu0 0.0
    %796 = vmatprep.subr.mxu0 0.0
    %797 = vmatpush1.msra.mxu0 0.0
    %798 = vmatprep.mubr.f32.mxu0 0.0
    %799 = vmatmul.mubr.f32.gmra.mrb[0].mxu0 %v711
    %v800 = vpop.f32.mrb[0].mxu0
    %v801 = vadd.f32 %v673, %v800
    %v802 = vpop.f32.mrb[0].mxu0
    %803 = vmatprep.mubr.f32.mxu0 0.0
    %804 = vmatmul.mubr.f32.gmra.mrb[0].mxu0 %v714
    %v805 = vpop.f32.mrb[0].mxu0
    %v806 = vadd.f32 %v678, %v805
    %v807 = vpop.f32.mrb[0].mxu0
    %808 = vmatprep.mubr.f32.mxu0 0.0
    %809 = vmatmul.mubr.f32.gmra.mrb[0].mxu0 %v717
    %v810 = vpop.f32.mrb[0].mxu0
    %v811 = vadd.f32 %v683, %v810
    %v812 = vpop.f32.mrb[0].mxu0
    %813 = vmatprep.mubr.f32.mxu0 0.0
    %814 = vmatmul.mubr.f32.gmra.mrb[0].mxu0 %v720
    %v815 = vpop.f32.mrb[0].mxu0
    %v816 = vadd.f32 %v688, %v815
    %v817 = vpop.f32.mrb[0].mxu0
    %818 = vmatprep.mubr.f32.mxu0 0.0
    %819 = vmatmul.mubr.f32.gmra.mrb[0].mxu0 %v723
    %v820 = vpop.f32.mrb[0].mxu0
    %v821 = vadd.f32 %v693, %v820
    %v822 = vpop.f32.mrb[0].mxu0
    %823 = vmatprep.mubr.f32.mxu0 0.0
    %824 = vmatmul.mubr.f32.gmra.mrb[0].mxu0 %v726
    %v825 = vpop.f32.mrb[0].mxu0
    %v826 = vadd.f32 %v698, %v825
    %v827 = vpop.f32.mrb[0].mxu0
    %828 = vmatprep.mubr.f32.mxu0 0.0
    %829 = vmatmul.mubr.f32.gmra.mrb[0].mxu0 %v729
    %v830 = vpop.f32.mrb[0].mxu0
    %v831 = vadd.f32 %v703, %v830
    %v832 = vpop.f32.mrb[0].mxu0
    %833 = vmatprep.mubr.f32.mxu0 0.0
    %834 = vmatmul.mubr.f32.gmra.mrb[0].mxu0 %v732
    %v835 = vpop.f32.mrb[0].mxu0
    %v836 = vadd.f32 %v708, %v835
    %v837 = vpop.f32.mrb[0].mxu0
    %838 = vdwg.mxu0
    %847 = vrot.lane.b32.xlu0 %v801, 127
    %v848 = vpop.permute.xlu0 %847
    %849 = vrot.lane.b32.xlu0 %v806, 127
    %v850 = vpop.permute.xlu0 %849
    %851 = vrot.lane.b32.xlu0 %v811, 127
    %v852 = vpop.permute.xlu0 %851
    %853 = vrot.lane.b32.xlu0 %v816, 127
    %v854 = vpop.permute.xlu0 %853
    %855 = vrot.lane.b32.xlu0 %v821, 127
    %v856 = vpop.permute.xlu0 %855
    %857 = vrot.lane.b32.xlu0 %v826, 127
    %v858 = vpop.permute.xlu0 %857
    %859 = vrot.lane.b32.xlu0 %v831, 127
    %v860 = vpop.permute.xlu0 %859
    %861 = vrot.lane.b32.xlu0 %v836, 127
    %v862 = vpop.permute.xlu0 %861
    %v871 = vsel %vm276, %v848, 0.0
    %v872 = vsel %vm276, %v850, 0.0
    %v873 = vsel %vm276, %v852, 0.0
    %v874 = vsel %vm276, %v854, 0.0
    %v875 = vsel %vm276, %v856, 0.0
    %v876 = vsel %vm276, %v858, 0.0
    %v877 = vsel %vm276, %v860, 0.0
    %v878 = vsel %vm276, %v862, 0.0
    %879 = vrot.lane.b32.xlu0 %v801, 126
    %v880 = vpop.permute.xlu0 %879
    %881 = vrot.lane.b32.xlu0 %v806, 126
    %v882 = vpop.permute.xlu0 %881
    %883 = vrot.lane.b32.xlu0 %v811, 126
    %v884 = vpop.permute.xlu0 %883
    %885 = vrot.lane.b32.xlu0 %v816, 126
    %v886 = vpop.permute.xlu0 %885
    %887 = vrot.lane.b32.xlu0 %v821, 126
    %v888 = vpop.permute.xlu0 %887
    %889 = vrot.lane.b32.xlu0 %v826, 126
    %v890 = vpop.permute.xlu0 %889
    %891 = vrot.lane.b32.xlu0 %v831, 126
    %v892 = vpop.permute.xlu0 %891
    %893 = vrot.lane.b32.xlu0 %v836, 126
    %v894 = vpop.permute.xlu0 %893
    %v903 = vsel %vm281, %v880, 0.0
    %v904 = vsel %vm281, %v882, 0.0
    %v905 = vsel %vm281, %v884, 0.0
    %v906 = vsel %vm281, %v886, 0.0
    %v907 = vsel %vm281, %v888, 0.0
    %v908 = vsel %vm281, %v890, 0.0
    %v909 = vsel %vm281, %v892, 0.0
    %v910 = vsel %vm281, %v894, 0.0
    %v911 = vld [vmem:[#allocation4 + $0x2e0] sm:$0xff]
    %v912 = vld [vmem:[#allocation4 + $0x2e8] sm:$0xff]
    %v913 = vld [vmem:[#allocation4 + $0x2f0] sm:$0xff]
    %v914 = vld [vmem:[#allocation4 + $0x2f8] sm:$0xff]
    %v915 = vld [vmem:[#allocation4 + $0x300] sm:$0xff]
    %v916 = vld [vmem:[#allocation4 + $0x310] sm:$0xff]
    %918 = vset.pattern.permute.xlu0 0
    %919 = vperm.xlu0 %918, %v915
    %v920 = vpop.permute.xlu0 %919
    %923 = vset.pattern.permute.xlu0 0
    %924 = vperm.xlu0 %923, %v916
    %v925 = vpop.permute.xlu0 %924
    %v928 = vsel %vm146, %v912, 0
    %v931 = vsel %vm146, %v914, 0
    %933 = vmatprep.subr.mxu0 0.0
    %934 = vmatpush1.msra.mxu0 %v801
    %935 = vmatprep.subr.mxu0 0.0
    %936 = vmatpush1.msra.mxu0 %v806
    %937 = vmatprep.subr.mxu0 0.0
    %938 = vmatpush1.msra.mxu0 %v811
    %939 = vmatprep.subr.mxu0 0.0
    %940 = vmatpush1.msra.mxu0 %v816
    %941 = vmatprep.subr.mxu0 0.0
    %942 = vmatpush1.msra.mxu0 %v821
    %943 = vmatprep.subr.mxu0 0.0
    %944 = vmatpush1.msra.mxu0 %v826
    %945 = vmatprep.subr.mxu0 0.0
    %946 = vmatpush1.msra.mxu0 %v831
    %947 = vmatprep.subr.mxu0 0.0
    %948 = vmatpush1.msra.mxu0 %v836
    %949 = vmatprep.subr.mxu0 0.0
    %950 = vmatpush1.msra.mxu0 %v871
    %951 = vmatprep.subr.mxu0 0.0
    %952 = vmatpush1.msra.mxu0 %v872
    %953 = vmatprep.subr.mxu0 0.0
    %954 = vmatpush1.msra.mxu0 %v873
    %955 = vmatprep.subr.mxu0 0.0
    %956 = vmatpush1.msra.mxu0 %v874
    %957 = vmatprep.subr.mxu0 0.0
    %958 = vmatpush1.msra.mxu0 %v875
    %959 = vmatprep.subr.mxu0 0.0
    %960 = vmatpush1.msra.mxu0 %v876
    %961 = vmatprep.subr.mxu0 0.0
    %962 = vmatpush1.msra.mxu0 %v877
    %963 = vmatprep.subr.mxu0 0.0
    %964 = vmatpush1.msra.mxu0 %v878
    %965 = vmatprep.subr.mxu0 0.0
    %966 = vmatpush1.msra.mxu0 %v903
    %967 = vmatprep.subr.mxu0 0.0
    %968 = vmatpush1.msra.mxu0 %v904
    %969 = vmatprep.subr.mxu0 0.0
    %970 = vmatpush1.msra.mxu0 %v905
    %971 = vmatprep.subr.mxu0 0.0
    %972 = vmatpush1.msra.mxu0 %v906
    %973 = vmatprep.subr.mxu0 0.0
    %974 = vmatpush1.msra.mxu0 %v907
    %975 = vmatprep.subr.mxu0 0.0
    %976 = vmatpush1.msra.mxu0 %v908
    %977 = vmatprep.subr.mxu0 0.0
    %978 = vmatpush1.msra.mxu0 %v909
    %979 = vmatprep.subr.mxu0 0.0
    %980 = vmatpush1.msra.mxu0 %v910
    %981 = vmatprep.subr.mxu0 0.0
    %982 = vmatpush1.msra.mxu0 0.0
    %983 = vmatprep.subr.mxu0 0.0
    %984 = vmatpush1.msra.mxu0 0.0
    %985 = vmatprep.subr.mxu0 0.0
    %986 = vmatpush1.msra.mxu0 0.0
    %987 = vmatprep.subr.mxu0 0.0
    %988 = vmatpush1.msra.mxu0 0.0
    %989 = vmatprep.subr.mxu0 0.0
    %990 = vmatpush1.msra.mxu0 0.0
    %991 = vmatprep.subr.mxu0 0.0
    %992 = vmatpush1.msra.mxu0 0.0
    %993 = vmatprep.subr.mxu0 0.0
    %994 = vmatpush1.msra.mxu0 0.0
    %995 = vmatprep.subr.mxu0 0.0
    %996 = vmatpush1.msra.mxu0 0.0
    %997 = vmatprep.mubr.f32.mxu0 %v928
    %998 = vmatmul.mubr.f32.gmra.mrb[0].mxu0 %v911
    %v999 = vpop.f32.mrb[0].mxu0
    %v1000 = vadd.f32 %v920, %v999
    %v1001 = vpop.f32.mrb[0].mxu0
    %1002 = vmatprep.mubr.f32.mxu0 %v931
    %1003 = vmatmul.mubr.f32.gmra.mrb[0].mxu0 %v913
    %v1004 = vpop.f32.mrb[0].mxu0
    %v1005 = vadd.f32 %v925, %v1004
    %v1006 = vpop.f32.mrb[0].mxu0
    %1007 = vdwg.mxu0
    %1008 = vxpose.xlu0.b32.start [1/16] %v1000, 128
    %1009 = vxpose.xlu0.b32.cont [2/16] %v1005, 128
    %1010 = vxpose.xlu0.b32.cont [3/16] 0.0, 128
    %1011 = vxpose.xlu0.b32.cont [4/16] 0.0, 128
    %1012 = vxpose.xlu0.b32.cont [5/16] 0.0, 128
    %1013 = vxpose.xlu0.b32.cont [6/16] 0.0, 128
    %1014 = vxpose.xlu0.b32.cont [7/16] 0.0, 128
    %1015 = vxpose.xlu0.b32.cont [8/16] 0.0, 128
    %1016 = vxpose.xlu0.b32.cont [9/16] 0.0, 128
    %1017 = vxpose.xlu0.b32.cont [10/16] 0.0, 128
    %1018 = vxpose.xlu0.b32.cont [11/16] 0.0, 128
    %1019 = vxpose.xlu0.b32.cont [12/16] 0.0, 128
    %1020 = vxpose.xlu0.b32.cont [13/16] 0.0, 128
    %1021 = vxpose.xlu0.b32.cont [14/16] 0.0, 128
    %1022 = vxpose.xlu0.b32.cont [15/16] 0.0, 128
    %1023 = vxpose.xlu0.b32.end [16/16] 0.0, 128
    %v1024 = vpop.trf.xlu0
    %v1025 = vpop.trf.xlu0
    %v1026 = vpop.trf.xlu0
    %v1027 = vpop.trf.xlu0
    %v1028 = vpop.trf.xlu0
    %v1029 = vpop.trf.xlu0
    %v1030 = vpop.trf.xlu0
    %v1031 = vpop.trf.xlu0
    %v1032 = vpop.trf.xlu0
    %v1033 = vpop.trf.xlu0
    %v1034 = vpop.trf.xlu0
    %v1035 = vpop.trf.xlu0
    %v1036 = vpop.trf.xlu0
    %v1037 = vpop.trf.xlu0
    %v1038 = vpop.trf.xlu0
    %v1039 = vpop.trf.xlu0
    %vm1040 = vcmask 130048
    %1041 = vst.msk [vmem:[%s2] sm:$0xff] %vm1040, %v1024
    %1042 = vst.msk [vmem:[%s2 + $0x8] sm:$0xff] %vm1040, %v1025
    %1043 = vst.msk [vmem:[%s2 + $0x10] sm:$0xff] %vm1040, %v1026
    %1044 = vst.msk [vmem:[%s2 + $0x18] sm:$0xff] %vm1040, %v1027
    %vm1045 = vcmask 123904
    %1046 = vst.msk [vmem:[%s2 + $0x20] sm:$0x3] %vm1045, %v1028
    %s1047 = scalar_lea.vmem %s2, 40
    %1048 = vst.msk [vmem:[%s1047] sm:$0xff] %vm1040, %v1029
    %1049 = vst.msk [vmem:[%s1047 + $0x8] sm:$0xff] %vm1040, %v1030
    %1050 = vst.msk [vmem:[%s1047 + $0x10] sm:$0xff] %vm1040, %v1031
    %1051 = vst.msk [vmem:[%s1047 + $0x18] sm:$0xff] %vm1040, %v1032
    %1052 = vst.msk [vmem:[%s1047 + $0x20] sm:$0x3] %vm1045, %v1033
    // Predicated region
    $region18: #{fwd.1} parent=1 // pred_check
      _
    $region19: #{fwd.1} parent=1 // pred_check_branch
      %1054 = sbr.rel (0) target = $region21
    $region20: #{fwd.1} parent=1 // pred_region
      _
    $region21: #{fwd.1} parent=1 // pred_fallthru
      _
    // Predicated region
    $region22: #{fwd.1} parent=1 // pred_check
      _
    $region23: #{fwd.1} parent=1 // pred_check_branch
      %1056 = sbr.rel (0) target = $region25
    $region24: #{fwd.1} parent=1 // pred_region
      _
    $region25: #{fwd.1} parent=1 // pred_fallthru
      _
    %1057 = vsyncpa [#allocation3], 1
    %1058 = vsyncpa [#allocation5], 1

</llo_original>
